<compile_context>
chip_gen: v7x
topology: tpu7x:2x2x1
jax: 0.10.0
libtpu: 0.0.40
codegen_flags: <defaults>
</compile_context>

<pallas_src>
import math

import jax
import jax.numpy as jnp
import numpy as np
from jax.experimental import pallas as pl
from jax.experimental.pallas import tpu as pltpu

LANE = 128        # TPU vreg lane width
SUBLANE = 8       # TPU vreg sublane height

IN_DIM, H1_DIM, H2_DIM, OUT_DIM = 4, 10, 8, 3
OUT_PAD = 8       # narrow lane-count of the HBM output slab (real lanes 0..2)
MAX_TILE_B = 1024 # batch tile (review: 512-2048); shrinks for tiny batches

# Packed-weight lane/row offsets (see header comment for the invariant).
L1_OFF = 16       # layer-1 activation lanes [16, 26)
L2_OFF = 32       # layer-2 activation lanes [32, 40)
OUT_OFF = 0       # final output lanes       [0, 3)


def net2_kernel(x_ref, w_ref, b_ref, out_ref):
    """Fused 3-layer MLP for one batch tile.

    x_ref  : (TILE_B, 4)    raw inputs (no lane padding in HBM)
    w_ref  : (128, 128)     packed W1^T / W2^T / W3^T (disjoint ranges)
    b_ref  : (8, 128)       row 0 = b1 @lanes 16..25, row 1 = b2 @32..39,
                            row 2 = b3 @lanes 0..2
    out_ref: (TILE_B, 8)    real outputs in lanes 0..2, lanes 3..7 are zero
    """
    x = x_ref[...]                                   # (TILE_B, 4) f32
    w = w_ref[...]                                   # (128, 128) packed RHS
    tb = x.shape[0]

    # ---- Layer 1: 4 rank-1 VPU updates (K=4), bias, ReLU -------------------
    # Rows 0..3 of the packed RHS hold only W1^T, so h1 is nonzero exactly on
    # lanes [16, 26).
    h1 = jnp.zeros((tb, LANE), jnp.float32)
    for k in range(IN_DIM):                          # static unroll
        h1 = h1 + x[:, k:k + 1] * w_ref[k:k + 1, :]
    h1 = jnp.maximum(h1 + b_ref[0:1, :], 0.0)

    # ---- Layer 2: MXU dot against the resident packed RHS, bias, ReLU ------
    # h1's nonzero rows (16..25) hit only W2^T -> h2 nonzero exactly on [32, 40).
    h2 = jnp.dot(h1, w, preferred_element_type=jnp.float32) + b_ref[1:2, :]
    h2 = jnp.maximum(h2, 0.0)

    # ---- Layer 3: MXU dot; outputs land in lanes [0, 3) ---------------------
    # h2's nonzero rows (32..39) hit only W3^T, so lanes 0..2 are exact and
    # lanes 3..7 of the stored slab are zero.
    y = jnp.dot(h2, w, preferred_element_type=jnp.float32) + b_ref[2:3, :]
    out_ref[...] = y[:, 0:OUT_PAD]


def prepare_params(params):
    """One-time prep: transpose + pack all weights/biases into two TPU tiles."""
    W1, b1, W2, b2, W3, b3 = params
    w = jnp.zeros((LANE, LANE), jnp.float32)
    w = w.at[0:IN_DIM, L1_OFF:L1_OFF + H1_DIM].set(
        jnp.transpose(W1).astype(jnp.float32))
    w = w.at[L1_OFF:L1_OFF + H1_DIM, L2_OFF:L2_OFF + H2_DIM].set(
        jnp.transpose(W2).astype(jnp.float32))
    w = w.at[L2_OFF:L2_OFF + H2_DIM, OUT_OFF:OUT_OFF + OUT_DIM].set(
        jnp.transpose(W3).astype(jnp.float32))

    b = jnp.zeros((SUBLANE, LANE), jnp.float32)
    b = b.at[0, L1_OFF:L1_OFF + H1_DIM].set(b1.astype(jnp.float32))
    b = b.at[1, L2_OFF:L2_OFF + H2_DIM].set(b2.astype(jnp.float32))
    b = b.at[2, OUT_OFF:OUT_OFF + OUT_DIM].set(b3.astype(jnp.float32))
    return (w, b)


def _round_up(n, m):
    return ((n + m - 1) // m) * m


@jax.jit
def net2_forward(x, prepared_params):
    """x: (B, 4) like the PyTorch module. Returns (B, 3)."""
    w, b = prepared_params
    B = x.shape[0]
    tile_b = min(MAX_TILE_B, _round_up(max(B, 1), SUBLANE))
    Bp = _round_up(B, tile_b)
    xp = jnp.pad(x.astype(jnp.float32), ((0, Bp - B), (0, 0)))   # (Bp, 4)

    out = pl.pallas_call(
        net2_kernel,
        out_shape=jax.ShapeDtypeStruct((Bp, OUT_PAD), jnp.float32),
        grid=(Bp // tile_b,),
        in_specs=[
            pl.BlockSpec((tile_b, IN_DIM), lambda i: (i, 0)),   # batch-tiled x
            pl.BlockSpec((LANE, LANE), lambda i: (0, 0)),       # resident weights
            pl.BlockSpec((SUBLANE, LANE), lambda i: (0, 0)),    # resident biases
        ],
        out_specs=pl.BlockSpec((tile_b, OUT_PAD), lambda i: (i, 0)),
        compiler_params=pltpu.CompilerParams(
            dimension_semantics=("parallel",)),                 # v7x megacore
    )(xp, w, b)
    # Padded batch rows contain relu(b1)->... garbage by construction; they are
    # sliced away here (fused into the same jit executable).
    return out[:B, :OUT_DIM]


def net2_reference(x, params):
    """Pure-JAX reference matching the PyTorch Net2 forward."""
    W1, b1, W2, b2, W3, b3 = params
    h1 = jnp.maximum(x @ W1.T + b1, 0.0)
    h2 = jnp.maximum(h1 @ W2.T + b2, 0.0)
    return h2 @ W3.T + b3


def init_params(key):
    """Deterministic init mimicking PyTorch Linear: U(-1/sqrt(fan_in), +)."""
    ks = jax.random.split(key, 6)

    def lin(kw, kb, fan_in, fan_out):
        s = 1.0 / math.sqrt(fan_in)
        W = jax.random.uniform(kw, (fan_out, fan_in), jnp.float32, -s, s)
        bb = jax.random.uniform(kb, (fan_out,), jnp.float32, -s, s)
        return W, bb

    W1, b1 = lin(ks[0], ks[1], IN_DIM, H1_DIM)
    W2, b2 = lin(ks[2], ks[3], H1_DIM, H2_DIM)
    W3, b3 = lin(ks[4], ks[5], H2_DIM, OUT_DIM)
    return (W1, b1, W2, b2, W3, b3)


if __name__ == "__main__":
    key = jax.random.PRNGKey(0)
    k_x, k_p, k_x2 = jax.random.split(key, 3)

    params = init_params(k_p)
    prepared = prepare_params(params)          # one-time weight prep (hoisted)

    # Small-batch latency case (matches the module spec: B=2, in=4).
    B = 2
    x = jax.random.normal(k_x, (B, IN_DIM), jnp.float32)
    out = jax.block_until_ready(net2_forward(x, prepared))
    ref = jax.block_until_ready(net2_reference(x, params))
    np.testing.assert_allclose(np.asarray(out), np.asarray(ref),
                               rtol=1e-3, atol=1e-3)
    assert out.shape == (B, OUT_DIM)

    # Exercise the multi-tile batch grid + row-padding path (3 grid steps).
    B2 = 2600
    x2 = jax.random.normal(k_x2, (B2, IN_DIM), jnp.float32)
    out2 = jax.block_until_ready(net2_forward(x2, prepared))
    ref2 = jax.block_until_ready(net2_reference(x2, params))
    np.testing.assert_allclose(np.asarray(out2), np.asarray(ref2),
                               rtol=1e-3, atol=1e-3)
    assert out2.shape == (B2, OUT_DIM)

    print("KERNEL_OK")
</pallas_src>

<mosaic_0001>
module attributes {stable_mosaic.version = 11 : i64} {
  func.func @net2_kernel(%arg0: i32, %arg1: memref<8x4xf32, #tpu.memory_space<vmem>>, %arg2: memref<128x128xf32, #tpu.memory_space<vmem>>, %arg3: memref<8x128xf32, #tpu.memory_space<vmem>>, %arg4: memref<8x8xf32, #tpu.memory_space<vmem>>) attributes {dimension_semantics = [#tpu.dimension_semantics<parallel>], iteration_bounds = array<i64: 1>, scalar_prefetch = 0 : i64, scratch_operands = 0 : i64, tpu.core_type = #tpu.core_type<tc>, window_params = [{transform_indices = @transform_0, window_bounds = array<i64: 8, 4>}, {pipeline_mode = #tpu.pipeline_mode<synchronous>, transform_indices = @transform_1, window_bounds = array<i64: 128, 128>}, {pipeline_mode = #tpu.pipeline_mode<synchronous>, transform_indices = @transform_2, window_bounds = array<i64: 8, 128>}, {transform_indices = @transform_3, window_bounds = array<i64: 8, 8>}]} {
    %c0 = arith.constant 0 : index
    %c0_0 = arith.constant 0 : index
    %0 = vector.load %arg1[%c0, %c0_0] : memref<8x4xf32, #tpu.memory_space<vmem>>, vector<8x4xf32>
    %c0_1 = arith.constant 0 : index
    %c0_2 = arith.constant 0 : index
    %1 = vector.load %arg2[%c0_1, %c0_2] : memref<128x128xf32, #tpu.memory_space<vmem>>, vector<128x128xf32>
    %cst = arith.constant 0.000000e+00 : f32
    %2 = vector.broadcast %cst : f32 to vector<8x128xf32>
    %3 = vector.extract_strided_slice %0 {offsets = [0, 0], sizes = [8, 1], strides = [1, 1]} : vector<8x4xf32> to vector<8x1xf32>
    %c0_3 = arith.constant 0 : index
    %c0_4 = arith.constant 0 : index
    %4 = vector.load %arg2[%c0_3, %c0_4] : memref<128x128xf32, #tpu.memory_space<vmem>>, vector<1x128xf32>
    %5 = vector.broadcast %3 : vector<8x1xf32> to vector<8x128xf32>
    %6 = vector.broadcast %4 : vector<1x128xf32> to vector<8x128xf32>
    %7 = arith.mulf %5, %6 : vector<8x128xf32>
    %8 = arith.addf %2, %7 : vector<8x128xf32>
    %9 = vector.extract_strided_slice %0 {offsets = [0, 1], sizes = [8, 1], strides = [1, 1]} : vector<8x4xf32> to vector<8x1xf32>
    %c1 = arith.constant 1 : index
    %c0_5 = arith.constant 0 : index
    %10 = vector.load %arg2[%c1, %c0_5] : memref<128x128xf32, #tpu.memory_space<vmem>>, vector<1x128xf32>
    %11 = vector.broadcast %9 : vector<8x1xf32> to vector<8x128xf32>
    %12 = vector.broadcast %10 : vector<1x128xf32> to vector<8x128xf32>
    %13 = arith.mulf %11, %12 : vector<8x128xf32>
    %14 = arith.addf %8, %13 : vector<8x128xf32>
    %15 = vector.extract_strided_slice %0 {offsets = [0, 2], sizes = [8, 1], strides = [1, 1]} : vector<8x4xf32> to vector<8x1xf32>
    %c2 = arith.constant 2 : index
    %c0_6 = arith.constant 0 : index
    %16 = vector.load %arg2[%c2, %c0_6] : memref<128x128xf32, #tpu.memory_space<vmem>>, vector<1x128xf32>
    %17 = vector.broadcast %15 : vector<8x1xf32> to vector<8x128xf32>
    %18 = vector.broadcast %16 : vector<1x128xf32> to vector<8x128xf32>
    %19 = arith.mulf %17, %18 : vector<8x128xf32>
    %20 = arith.addf %14, %19 : vector<8x128xf32>
    %21 = vector.extract_strided_slice %0 {offsets = [0, 3], sizes = [8, 1], strides = [1, 1]} : vector<8x4xf32> to vector<8x1xf32>
    %c3 = arith.constant 3 : index
    %c0_7 = arith.constant 0 : index
    %22 = vector.load %arg2[%c3, %c0_7] : memref<128x128xf32, #tpu.memory_space<vmem>>, vector<1x128xf32>
    %23 = vector.broadcast %21 : vector<8x1xf32> to vector<8x128xf32>
    %24 = vector.broadcast %22 : vector<1x128xf32> to vector<8x128xf32>
    %25 = arith.mulf %23, %24 : vector<8x128xf32>
    %26 = arith.addf %20, %25 : vector<8x128xf32>
    %c0_8 = arith.constant 0 : index
    %c0_9 = arith.constant 0 : index
    %27 = vector.load %arg3[%c0_8, %c0_9] : memref<8x128xf32, #tpu.memory_space<vmem>>, vector<1x128xf32>
    %28 = vector.broadcast %27 : vector<1x128xf32> to vector<8x128xf32>
    %29 = arith.addf %26, %28 : vector<8x128xf32>
    %cst_10 = arith.constant 0.000000e+00 : f32
    %30 = vector.broadcast %cst_10 : f32 to vector<8x128xf32>
    %31 = arith.maximumf %29, %30 : vector<8x128xf32>
    %cst_11 = arith.constant dense<0.000000e+00> : vector<8x128xf32>
    %32 = tpu.matmul %31, %1, %cst_11 {dimension_numbers = #tpu.dot_dimension_numbers<[1], [0], [0], [1], [0, 0, 1, 1], [], []>} : vector<8x128xf32>, vector<128x128xf32>, vector<8x128xf32> -> vector<8x128xf32>
    %c1_12 = arith.constant 1 : index
    %c0_13 = arith.constant 0 : index
    %33 = vector.load %arg3[%c1_12, %c0_13] : memref<8x128xf32, #tpu.memory_space<vmem>>, vector<1x128xf32>
    %34 = vector.broadcast %33 : vector<1x128xf32> to vector<8x128xf32>
    %35 = arith.addf %32, %34 : vector<8x128xf32>
    %cst_14 = arith.constant 0.000000e+00 : f32
    %36 = vector.broadcast %cst_14 : f32 to vector<8x128xf32>
    %37 = arith.maximumf %35, %36 : vector<8x128xf32>
    %cst_15 = arith.constant dense<0.000000e+00> : vector<8x128xf32>
    %38 = tpu.matmul %37, %1, %cst_15 {dimension_numbers = #tpu.dot_dimension_numbers<[1], [0], [0], [1], [0, 0, 1, 1], [], []>} : vector<8x128xf32>, vector<128x128xf32>, vector<8x128xf32> -> vector<8x128xf32>
    %c2_16 = arith.constant 2 : index
    %c0_17 = arith.constant 0 : index
    %39 = vector.load %arg3[%c2_16, %c0_17] : memref<8x128xf32, #tpu.memory_space<vmem>>, vector<1x128xf32>
    %40 = vector.broadcast %39 : vector<1x128xf32> to vector<8x128xf32>
    %41 = arith.addf %38, %40 : vector<8x128xf32>
    %42 = vector.extract_strided_slice %41 {offsets = [0, 0], sizes = [8, 8], strides = [1, 1]} : vector<8x128xf32> to vector<8x8xf32>
    %c0_18 = arith.constant 0 : index
    %c0_19 = arith.constant 0 : index
    %43 = vector.load %arg4[%c0_18, %c0_19] : memref<8x8xf32, #tpu.memory_space<vmem>>, vector<8x8xf32>
    tpu.vector_store %arg4[%c0_18, %c0_19], %42 {strides = array<i32>} : memref<8x8xf32, #tpu.memory_space<vmem>>, vector<8x8xf32>,
    return
  }
  func.func @transform_0(%arg0: i32) -> (i32, i32) {
    %c0_i32 = arith.constant 0 : i32
    %c0_i32_0 = arith.constant 0 : i32
    return %arg0, %c0_i32 : i32, i32
  }
  func.func @transform_1(%arg0: i32) -> (i32, i32) {
    %c0_i32 = arith.constant 0 : i32
    %c0_i32_0 = arith.constant 0 : i32
    %c0_i32_1 = arith.constant 0 : i32
    return %c0_i32, %c0_i32_0 : i32, i32
  }
  func.func @transform_2(%arg0: i32) -> (i32, i32) {
    %c0_i32 = arith.constant 0 : i32
    %c0_i32_0 = arith.constant 0 : i32
    %c0_i32_1 = arith.constant 0 : i32
    return %c0_i32, %c0_i32_0 : i32, i32
  }
  func.func @transform_3(%arg0: i32) -> (i32, i32) {
    %c0_i32 = arith.constant 0 : i32
    %c0_i32_0 = arith.constant 0 : i32
    return %arg0, %c0_i32 : i32, i32
  }
}

</mosaic_0001>

<llo_original>
// kernel: net2_forward.1
$region0: #{net2_forward.1}
  #allocation0 [shape = 'u32[]', space=smem, size = 0x4, offset = 0x4, fixed_abs, tag = 'smem constant byte address 0x4 - core index']
  #allocation1 [shape = 'u32[144,128]{1,0:T(1,128)}', space=vmem, size = 0x12000, scoped, tag = 'internal scratch']
  %s0 = inlined_call_operand.vmem [shape: f32[8,4], index: 0, kind: input, shape index: {}]
  %s1 = inlined_call_operand.hbm [shape: f32[128,128], index: 1, kind: input, shape index: {}]
  %s2 = inlined_call_operand.vmem [shape: f32[8,128], index: 2, kind: input, shape index: {}]
  %s3 = inlined_call_operand.vmem [shape: f32[8,8], index: 3, kind: output, shape index: {}]
  %s4 = sld [smem:[#allocation0]]
  $region26: #{net2_forward.1} parent=0
    _
  %s6 = ssub.s32 1, %s4
  %s7 = scalar_select 0, %s6, %s4
  $region1: #{net2_forward.1} parent=0
    #allocation2 [shape = 'u8[65536]{0}', space=vmem, size = 0x10000, scoped, tag = 'input window, operand 1, single buffered']
    #allocation3 [shape = 's32[1]{0}', space=sflag, size = 0x4, scoped, tag = 'scoped memory for net2_forward.1']
    %8 = vsyncpa [#allocation3], 0
    // Predicated region
    $region2: #{net2_forward.1} parent=1 // pred_check
      _
    $region3: #{net2_forward.1} parent=1 // pred_check_branch
      %10 = sbr.rel (0) target = $region5
    $region4: #{net2_forward.1} parent=1 // pred_region
      _
    $region5: #{net2_forward.1} parent=1 // pred_fallthru
      _
    // Predicated region
    $region6: #{net2_forward.1} parent=1 // pred_check
      _
    $region7: #{net2_forward.1} parent=1 // pred_check_branch
      %12 = sbr.rel (0) target = $region9
    $region8: #{net2_forward.1} parent=1 // pred_region
      %s14 = ssub.s32 2048, 2048
      %15 = vsyncadd [#allocation3], %s14
      %s16 = sshll.u32 [#allocation2], 4
      %s17 = int_to_ptr.vmem [resolvable:$true] %s16
      %22 = dma.hbm_to_vmem [thread:$0]  %s1, 2048, %s17, [#allocation3], 128, 128, 8
    $region9: #{net2_forward.1} parent=1 // pred_fallthru
      _
    // Predicated region
    $region10: #{net2_forward.1} parent=1 // pred_check
      _
    $region11: #{net2_forward.1} parent=1 // pred_check_branch
      %24 = sbr.rel (0) target = $region13
    $region12: #{net2_forward.1} parent=1 // pred_region
      _
    $region13: #{net2_forward.1} parent=1 // pred_fallthru
      _
    // Predicated region
    $region14: #{net2_forward.1} parent=1 // pred_check
      _
    $region15: #{net2_forward.1} parent=1 // pred_check_branch
      %26 = sbr.rel (0) target = $region17
    $region16: #{net2_forward.1} parent=1 // pred_region
      %27 = dma.done [#allocation3], 2048
    $region17: #{net2_forward.1} parent=1 // pred_fallthru
      _
    %v28 = vld [vmem:[%s0] sm:$0xff]
    %v29 = vld [vmem:[#allocation2] sm:$0xff]
    %v30 = vld [vmem:[#allocation2 + $0x8] sm:$0xff]
    %v31 = vld [vmem:[#allocation2 + $0x10] sm:$0xff]
    %v32 = vld [vmem:[#allocation2 + $0x18] sm:$0xff]
    %v33 = vld [vmem:[#allocation2 + $0x20] sm:$0xff]
    %v34 = vld [vmem:[#allocation2 + $0x28] sm:$0xff]
    %v35 = vld [vmem:[#allocation2 + $0x30] sm:$0xff]
    %v36 = vld [vmem:[#allocation2 + $0x38] sm:$0xff]
    %v37 = vld [vmem:[#allocation2 + $0x40] sm:$0xff]
    %v38 = vld [vmem:[#allocation2 + $0x48] sm:$0xff]
    %v39 = vld [vmem:[#allocation2 + $0x50] sm:$0xff]
    %v40 = vld [vmem:[#allocation2 + $0x58] sm:$0xff]
    %v41 = vld [vmem:[#allocation2 + $0x60] sm:$0xff]
    %v42 = vld [vmem:[#allocation2 + $0x68] sm:$0xff]
    %v43 = vld [vmem:[#allocation2 + $0x70] sm:$0xff]
    %v44 = vld [vmem:[#allocation2 + $0x78] sm:$0xff]
    %v45 = vld [vmem:[#allocation2] sm:$0x1]
    %47 = vset.pattern.permute.xlu0 0
    %48 = vperm.xlu0 %47, %v28
    %v49 = vpop.permute.xlu0 %48
    %v51 = vlaneseq
    %v52 = vshrl.u32 %v51, 7
    %v53 = vsub.s32 0, %v52
    %v54 = vrot.slane %v45, %v53
    %v55 = vmul.f32 %v49, %v54
    %v56 = vadd.f32 %v55, 0.0
    %v57 = vld [vmem:[#allocation2 + $0x1] sm:$0x1]
    %58 = vset.pattern.permute.xlu0 1
    %59 = vperm.xlu0 %58, %v28
    %v60 = vpop.permute.xlu0 %59
    %v62 = vlaneseq
    %v63 = vshrl.u32 %v62, 7
    %v64 = vsub.s32 0, %v63
    %v65 = vrot.slane %v57, %v64
    %v66 = vmul.f32 %v60, %v65
    %v67 = vadd.f32 %v56, %v66
    %v68 = vld [vmem:[#allocation2 + $0x2] sm:$0x1]
    %69 = vset.pattern.permute.xlu0 2
    %70 = vperm.xlu0 %69, %v28
    %v71 = vpop.permute.xlu0 %70
    %v73 = vlaneseq
    %v74 = vshrl.u32 %v73, 7
    %v75 = vsub.s32 0, %v74
    %v76 = vrot.slane %v68, %v75
    %v77 = vmul.f32 %v71, %v76
    %v78 = vadd.f32 %v67, %v77
    %v79 = vld [vmem:[#allocation2 + $0x3] sm:$0x1]
    %80 = vset.pattern.permute.xlu0 3
    %81 = vperm.xlu0 %80, %v28
    %v82 = vpop.permute.xlu0 %81
    %v84 = vlaneseq
    %v85 = vshrl.u32 %v84, 7
    %v86 = vsub.s32 0, %v85
    %v87 = vrot.slane %v79, %v86
    %v88 = vmul.f32 %v82, %v87
    %v89 = vadd.f32 %v78, %v88
    %v90 = vld [vmem:[%s2] sm:$0x1]
    %v91 = vlaneseq
    %v92 = vshrl.u32 %v91, 7
    %v93 = vsub.s32 0, %v92
    %v94 = vrot.slane %v90, %v93
    %v95 = vadd.f32 %v89, %v94
    %v96 = vmax.f32 %v95, 0.0
    %v97 = vld [vmem:[%s2 + $0x1] sm:$0x1]
    %v98 = vlaneseq
    %v99 = vshrl.u32 %v98, 7
    %v100 = vsub.s32 0, %v99
    %v101 = vrot.slane %v97, %v100
    %102 = vmatprep.subr.mxu0 0.0
    %103 = vmatpush1.msra.mxu0 %v29
    %104 = vmatprep.subr.mxu0 0.0
    %105 = vmatpush1.msra.mxu0 %v30
    %106 = vmatprep.subr.mxu0 0.0
    %107 = vmatpush1.msra.mxu0 %v31
    %108 = vmatprep.subr.mxu0 0.0
    %109 = vmatpush1.msra.mxu0 %v32
    %110 = vmatprep.subr.mxu0 0.0
    %111 = vmatpush1.msra.mxu0 %v33
    %112 = vmatprep.subr.mxu0 0.0
    %113 = vmatpush1.msra.mxu0 %v34
    %114 = vmatprep.subr.mxu0 0.0
    %115 = vmatpush1.msra.mxu0 %v35
    %116 = vmatprep.subr.mxu0 0.0
    %117 = vmatpush1.msra.mxu0 %v36
    %118 = vmatprep.subr.mxu0 0.0
    %119 = vmatpush1.msra.mxu0 %v37
    %120 = vmatprep.subr.mxu0 0.0
    %121 = vmatpush1.msra.mxu0 %v38
    %122 = vmatprep.subr.mxu0 0.0
    %123 = vmatpush1.msra.mxu0 %v39
    %124 = vmatprep.subr.mxu0 0.0
    %125 = vmatpush1.msra.mxu0 %v40
    %126 = vmatprep.subr.mxu0 0.0
    %127 = vmatpush1.msra.mxu0 %v41
    %128 = vmatprep.subr.mxu0 0.0
    %129 = vmatpush1.msra.mxu0 %v42
    %130 = vmatprep.subr.mxu0 0.0
    %131 = vmatpush1.msra.mxu0 %v43
    %132 = vmatprep.subr.mxu0 0.0
    %133 = vmatpush1.msra.mxu0 %v44
    %134 = vmatprep.subr.mxu0 0.0
    %135 = vmatpush1.msra.mxu0 0.0
    %136 = vmatprep.subr.mxu0 0.0
    %137 = vmatpush1.msra.mxu0 0.0
    %138 = vmatprep.subr.mxu0 0.0
    %139 = vmatpush1.msra.mxu0 0.0
    %140 = vmatprep.subr.mxu0 0.0
    %141 = vmatpush1.msra.mxu0 0.0
    %142 = vmatprep.subr.mxu0 0.0
    %143 = vmatpush1.msra.mxu0 0.0
    %144 = vmatprep.subr.mxu0 0.0
    %145 = vmatpush1.msra.mxu0 0.0
    %146 = vmatprep.subr.mxu0 0.0
    %147 = vmatpush1.msra.mxu0 0.0
    %148 = vmatprep.subr.mxu0 0.0
    %149 = vmatpush1.msra.mxu0 0.0
    %150 = vmatprep.subr.mxu0 0.0
    %151 = vmatpush1.msra.mxu0 0.0
    %152 = vmatprep.subr.mxu0 0.0
    %153 = vmatpush1.msra.mxu0 0.0
    %154 = vmatprep.subr.mxu0 0.0
    %155 = vmatpush1.msra.mxu0 0.0
    %156 = vmatprep.subr.mxu0 0.0
    %157 = vmatpush1.msra.mxu0 0.0
    %158 = vmatprep.subr.mxu0 0.0
    %159 = vmatpush1.msra.mxu0 0.0
    %160 = vmatprep.subr.mxu0 0.0
    %161 = vmatpush1.msra.mxu0 0.0
    %162 = vmatprep.subr.mxu0 0.0
    %163 = vmatpush1.msra.mxu0 0.0
    %164 = vmatprep.subr.mxu0 0.0
    %165 = vmatpush1.msra.mxu0 0.0
    %166 = vmatprep.mubr.f32.mxu0 0.0
    %167 = vmatmul.mubr.f32.gmra.mrb[0].mxu0 %v96
    %v168 = vpop.f32.mrb[0].mxu0
    %v169 = vadd.f32 %v101, %v168
    %v170 = vpop.f32.mrb[0].mxu0
    %171 = vdwg.mxu0
    %v172 = vmax.f32 %v169, 0.0
    %v173 = vld [vmem:[%s2 + $0x2] sm:$0x1]
    %v174 = vlaneseq
    %v175 = vshrl.u32 %v174, 7
    %v176 = vsub.s32 0, %v175
    %v177 = vrot.slane %v173, %v176
    %178 = vmatprep.subr.mxu0 0.0
    %179 = vmatpush1.msra.mxu0 %v29
    %180 = vmatprep.subr.mxu0 0.0
    %181 = vmatpush1.msra.mxu0 %v30
    %182 = vmatprep.subr.mxu0 0.0
    %183 = vmatpush1.msra.mxu0 %v31
    %184 = vmatprep.subr.mxu0 0.0
    %185 = vmatpush1.msra.mxu0 %v32
    %186 = vmatprep.subr.mxu0 0.0
    %187 = vmatpush1.msra.mxu0 %v33
    %188 = vmatprep.subr.mxu0 0.0
    %189 = vmatpush1.msra.mxu0 %v34
    %190 = vmatprep.subr.mxu0 0.0
    %191 = vmatpush1.msra.mxu0 %v35
    %192 = vmatprep.subr.mxu0 0.0
    %193 = vmatpush1.msra.mxu0 %v36
    %194 = vmatprep.subr.mxu0 0.0
    %195 = vmatpush1.msra.mxu0 %v37
    %196 = vmatprep.subr.mxu0 0.0
    %197 = vmatpush1.msra.mxu0 %v38
    %198 = vmatprep.subr.mxu0 0.0
    %199 = vmatpush1.msra.mxu0 %v39
    %200 = vmatprep.subr.mxu0 0.0
    %201 = vmatpush1.msra.mxu0 %v40
    %202 = vmatprep.subr.mxu0 0.0
    %203 = vmatpush1.msra.mxu0 %v41
    %204 = vmatprep.subr.mxu0 0.0
    %205 = vmatpush1.msra.mxu0 %v42
    %206 = vmatprep.subr.mxu0 0.0
    %207 = vmatpush1.msra.mxu0 %v43
    %208 = vmatprep.subr.mxu0 0.0
    %209 = vmatpush1.msra.mxu0 %v44
    %210 = vmatprep.subr.mxu0 0.0
    %211 = vmatpush1.msra.mxu0 0.0
    %212 = vmatprep.subr.mxu0 0.0
    %213 = vmatpush1.msra.mxu0 0.0
    %214 = vmatprep.subr.mxu0 0.0
    %215 = vmatpush1.msra.mxu0 0.0
    %216 = vmatprep.subr.mxu0 0.0
    %217 = vmatpush1.msra.mxu0 0.0
    %218 = vmatprep.subr.mxu0 0.0
    %219 = vmatpush1.msra.mxu0 0.0
    %220 = vmatprep.subr.mxu0 0.0
    %221 = vmatpush1.msra.mxu0 0.0
    %222 = vmatprep.subr.mxu0 0.0
    %223 = vmatpush1.msra.mxu0 0.0
    %224 = vmatprep.subr.mxu0 0.0
    %225 = vmatpush1.msra.mxu0 0.0
    %226 = vmatprep.subr.mxu0 0.0
    %227 = vmatpush1.msra.mxu0 0.0
    %228 = vmatprep.subr.mxu0 0.0
    %229 = vmatpush1.msra.mxu0 0.0
    %230 = vmatprep.subr.mxu0 0.0
    %231 = vmatpush1.msra.mxu0 0.0
    %232 = vmatprep.subr.mxu0 0.0
    %233 = vmatpush1.msra.mxu0 0.0
    %234 = vmatprep.subr.mxu0 0.0
    %235 = vmatpush1.msra.mxu0 0.0
    %236 = vmatprep.subr.mxu0 0.0
    %237 = vmatpush1.msra.mxu0 0.0
    %238 = vmatprep.subr.mxu0 0.0
    %239 = vmatpush1.msra.mxu0 0.0
    %240 = vmatprep.subr.mxu0 0.0
    %241 = vmatpush1.msra.mxu0 0.0
    %242 = vmatprep.mubr.f32.mxu0 0.0
    %243 = vmatmul.mubr.f32.gmra.mrb[0].mxu0 %v172
    %v244 = vpop.f32.mrb[0].mxu0
    %v245 = vadd.f32 %v177, %v244
    %v246 = vpop.f32.mrb[0].mxu0
    %247 = vdwg.mxu0
    %vm248 = vcmask 64512
    %249 = vst.msk [vmem:[%s3] sm:$0xff] %vm248, %v245
    // Predicated region
    $region18: #{net2_forward.1} parent=1 // pred_check
      _
    $region19: #{net2_forward.1} parent=1 // pred_check_branch
      %251 = sbr.rel (0) target = $region21
    $region20: #{net2_forward.1} parent=1 // pred_region
      _
    $region21: #{net2_forward.1} parent=1 // pred_fallthru
      _
    // Predicated region
    $region22: #{net2_forward.1} parent=1 // pred_check
      _
    $region23: #{net2_forward.1} parent=1 // pred_check_branch
      %253 = sbr.rel (0) target = $region25
    $region24: #{net2_forward.1} parent=1 // pred_region
      _
    $region25: #{net2_forward.1} parent=1 // pred_fallthru
      _
    %254 = vsyncpa [#allocation3], 1

</llo_original>
